<compile_context>
chip_gen: v7x
topology: tpu7x:2x2x1
jax: 0.10.0
libtpu: 0.0.40
codegen_flags: <defaults>
</compile_context>

<pallas_src>
import functools

import jax
import jax.numpy as jnp
from jax.experimental import pallas as pl
from jax.experimental.pallas import tpu as pltpu


def _round_up(x, m):
    return ((x + m - 1) // m) * m


def _jw_kernel(x_ref, w13_ref, wf_ref, bf_ref, o_ref, *, acc_dtype):
    hp = wf_ref.shape[0]                        # padded hidden size (1024)
    # One wide MXU push covers X@V, Linear1 and Linear3 (V and biases folded in).
    ac = jnp.dot(x_ref[...], w13_ref[...], preferred_element_type=acc_dtype)
    # cat(dim=2) + MaxPool1d(2) + squeeze  ==  elementwise max of the two halves.
    m = jnp.maximum(ac[:, :hp], ac[:, hp:])
    # FinLin (bf16 MXU matmul, f32 accumulate, lane-dense padded output).
    out = jnp.dot(m.astype(wf_ref.dtype), wf_ref[...],
                  preferred_element_type=jnp.float32) + bf_ref[...]
    o_ref[...] = out.astype(o_ref.dtype)


def _default_acc_dtype():
    """bf16 intermediates only where the VPU has native bf16 (v6e / v7x)."""
    try:
        kind = jax.devices()[0].device_kind.lower()
    except Exception:
        kind = ""
    return jnp.bfloat16 if ("v6" in kind or "v7" in kind) else jnp.float32


def _batch_tiling(B, tile_b):
    """Pad batch only to a sublane multiple (never a full tile multiple) and
    guarantee >= 2 grid steps when possible so both v7x TensorCores get work."""
    bp = _round_up(B, 8)
    tb = min(_round_up(tile_b, 8), bp)
    if bp // tb < 2 and bp >= 16:
        tb = _round_up((bp + 1) // 2, 8)
    grid = (bp + tb - 1) // tb
    return bp, tb, grid


def prepare_jw_params(v, w1, b1, w3, b3, wf, bf):
    """One-time (model-load) constant folding; keep OUT of the per-call jit path.

    v:(K,d_in)  w1/w3:(d_in,H) pre-transposed  b1/b3:(1,H)
    wf:(H,d_out) pre-transposed  bf:(1,d_out)
    Returns (w13, wfp, bfp, d_out) with
      w13:(K+1, 2*Hp) bf16 = [[V@W1 | V@W3], [b1 | b3]]   (biases folded in)
      wfp:(Hp, Dp)    bf16   zero-padded FinLin weight
      bfp:(1, Dp)     f32    zero-padded FinLin bias
    """
    H = w1.shape[1]
    d_out = wf.shape[1]
    hp = _round_up(H, 128)          # 1000 -> 1024 (lane-dense hidden dim)
    dp = _round_up(d_out, 128)      # lane-dense output slab, trimmed after the call

    vw1 = jnp.pad(v @ w1, ((0, 0), (0, hp - H)))                  # (K, Hp)
    vw3 = jnp.pad(v @ w3, ((0, 0), (0, hp - H)))                  # (K, Hp)
    b1p = jnp.pad(b1, ((0, 0), (0, hp - H)))                      # (1, Hp)
    b3p = jnp.pad(b3, ((0, 0), (0, hp - H)))                      # (1, Hp)
    w13 = jnp.concatenate(
        [jnp.concatenate([vw1, vw3], axis=1),
         jnp.concatenate([b1p, b3p], axis=1)], axis=0).astype(jnp.bfloat16)  # (K+1, 2Hp)
    wfp = jnp.pad(wf, ((0, hp - H), (0, dp - d_out))).astype(jnp.bfloat16)   # (Hp, Dp)
    bfp = jnp.pad(bf, ((0, 0), (0, dp - d_out))).astype(jnp.float32)         # (1, Dp)
    return w13, wfp, bfp, d_out


@functools.partial(jax.jit, static_argnames=("d_out", "tile_b", "acc_dtype"))
def jw_model0_forward(x, w13, wfp, bfp, *, d_out, tile_b=512,
                      acc_dtype=jnp.float32):
    """x:(B,K); w13/wfp/bfp are the folded weights from prepare_jw_params()."""
    B, K = x.shape
    kp1 = w13.shape[0]              # K + 1 (bias row folded into the contraction)
    hp, dp = wfp.shape

    bp, tb, grid = _batch_tiling(B, tile_b)

    # Constant-1 column folds the [b1|b3] bias row into the first matmul.
    xp = jnp.concatenate([x, jnp.ones((B, 1), x.dtype)], axis=1)
    xp = jnp.pad(xp, ((0, bp - B), (0, 0))).astype(jnp.bfloat16)

    kernel = functools.partial(_jw_kernel, acc_dtype=acc_dtype)
    out_padded = pl.pallas_call(
        kernel,
        out_shape=jax.ShapeDtypeStruct((bp, dp), jnp.float32),
        grid=(grid,),
        in_specs=[
            pl.BlockSpec((tb, kp1),     lambda i: (i, 0)),   # x tile (batch-tiled)
            pl.BlockSpec((kp1, 2 * hp), lambda i: (0, 0)),   # fused [V@W1|V@W3 ; b1|b3]
            pl.BlockSpec((hp, dp),      lambda i: (0, 0)),   # FinLin weight
            pl.BlockSpec((1, dp),       lambda i: (0, 0)),   # FinLin bias
        ],
        out_specs=pl.BlockSpec((tb, dp), lambda i: (i, 0)),
        compiler_params=pltpu.CompilerParams(
            dimension_semantics=("parallel",)),
    )(xp, w13, wfp, bfp)

    return out_padded[:B, :d_out]


def _reference(x, v, w1, b1, w3, b3, wf, bf):
    y = x @ v
    a = y @ w1 + b1
    c = y @ w3 + b3
    m = jnp.maximum(a, c)
    return m @ wf + bf


if __name__ == "__main__":
    # Small shapes consistent with the module: X:(B,K), V:(K,d_in), hidden H=1000.
    B, K, d_in, H, d_out = 8, 64, 32, 1000, 16

    key = jax.random.PRNGKey(0)
    kx, kv, k1, kb1, k3, kb3, kf, kbf = jax.random.split(key, 8)

    x = jax.random.normal(kx, (B, K), dtype=jnp.float32)
    v = jax.random.normal(kv, (K, d_in), dtype=jnp.float32) * 0.1

    # Parameters pre-transposed to (in_features, out_features); biases (1, out).
    w1 = jax.random.uniform(k1, (d_in, H), jnp.float32, -0.1, 0.1)
    b1 = jax.random.uniform(kb1, (1, H), jnp.float32, -0.1, 0.1)
    w3 = jax.random.uniform(k3, (d_in, H), jnp.float32, -0.1, 0.1)
    b3 = jax.random.uniform(kb3, (1, H), jnp.float32, -0.1, 0.1)
    wf = jax.random.uniform(kf, (H, d_out), jnp.float32, -0.03, 0.03)
    bf = jax.random.uniform(kbf, (1, d_out), jnp.float32, -0.03, 0.03)

    # One-time weight folding (model-load time), then the jitted fused forward.
    w13, wfp, bfp, d_out_folded = prepare_jw_params(v, w1, b1, w3, b3, wf, bf)
    acc_dtype = _default_acc_dtype()

    out = jax.block_until_ready(
        jw_model0_forward(x, w13, wfp, bfp, d_out=d_out_folded,
                          acc_dtype=acc_dtype))
    ref = _reference(x, v, w1, b1, w3, b3, wf, bf)

    assert out.shape == (B, d_out)
    # bf16 matmuls (and bf16 intermediate on v6e/v7x) -> looser tolerance vs f32 ref.
    assert jnp.allclose(out, ref, atol=2e-2, rtol=2e-2), "mismatch vs reference"

    print("KERNEL_OK")
</pallas_src>

<mosaic_0001>
module attributes {stable_mosaic.version = 11 : i64} {
  func.func @_jw_kernel(%arg0: i32, %arg1: memref<8x65xbf16, #tpu.memory_space<vmem>>, %arg2: memref<65x2048xbf16, #tpu.memory_space<vmem>>, %arg3: memref<1024x128xbf16, #tpu.memory_space<vmem>>, %arg4: memref<1x128xf32, #tpu.memory_space<vmem>>, %arg5: memref<8x128xf32, #tpu.memory_space<vmem>>) attributes {dimension_semantics = [#tpu.dimension_semantics<parallel>], iteration_bounds = array<i64: 1>, scalar_prefetch = 0 : i64, scratch_operands = 0 : i64, tpu.core_type = #tpu.core_type<tc>, window_params = [{transform_indices = @transform_0, window_bounds = array<i64: 8, 65>}, {pipeline_mode = #tpu.pipeline_mode<synchronous>, transform_indices = @transform_1, window_bounds = array<i64: 65, 2048>}, {pipeline_mode = #tpu.pipeline_mode<synchronous>, transform_indices = @transform_2, window_bounds = array<i64: 1024, 128>}, {pipeline_mode = #tpu.pipeline_mode<synchronous>, transform_indices = @transform_3, window_bounds = array<i64: 1, 128>}, {transform_indices = @transform_4, window_bounds = array<i64: 8, 128>}]} {
    %c0 = arith.constant 0 : index
    %c0_0 = arith.constant 0 : index
    %0 = vector.load %arg1[%c0, %c0_0] : memref<8x65xbf16, #tpu.memory_space<vmem>>, vector<8x65xbf16>
    %c0_1 = arith.constant 0 : index
    %c0_2 = arith.constant 0 : index
    %1 = vector.load %arg2[%c0_1, %c0_2] : memref<65x2048xbf16, #tpu.memory_space<vmem>>, vector<65x2048xbf16>
    %cst = arith.constant dense<0.000000e+00> : vector<8x2048xf32>
    %2 = tpu.matmul %0, %1, %cst {dimension_numbers = #tpu.dot_dimension_numbers<[1], [0], [0], [1], [0, 0, 1, 1], [], []>} : vector<8x65xbf16>, vector<65x2048xbf16>, vector<8x2048xf32> -> vector<8x2048xf32>
    %3 = vector.extract_strided_slice %2 {offsets = [0, 0], sizes = [8, 1024], strides = [1, 1]} : vector<8x2048xf32> to vector<8x1024xf32>
    %4 = vector.extract_strided_slice %2 {offsets = [0, 1024], sizes = [8, 1024], strides = [1, 1]} : vector<8x2048xf32> to vector<8x1024xf32>
    %5 = arith.maximumf %3, %4 : vector<8x1024xf32>
    %6 = arith.truncf %5 : vector<8x1024xf32> to vector<8x1024xbf16>
    %c0_3 = arith.constant 0 : index
    %c0_4 = arith.constant 0 : index
    %7 = vector.load %arg3[%c0_3, %c0_4] : memref<1024x128xbf16, #tpu.memory_space<vmem>>, vector<1024x128xbf16>
    %cst_5 = arith.constant dense<0.000000e+00> : vector<8x128xf32>
    %8 = tpu.matmul %6, %7, %cst_5 {dimension_numbers = #tpu.dot_dimension_numbers<[1], [0], [0], [1], [0, 0, 1, 1], [], []>} : vector<8x1024xbf16>, vector<1024x128xbf16>, vector<8x128xf32> -> vector<8x128xf32>
    %c0_6 = arith.constant 0 : index
    %c0_7 = arith.constant 0 : index
    %9 = vector.load %arg4[%c0_6, %c0_7] : memref<1x128xf32, #tpu.memory_space<vmem>>, vector<1x128xf32>
    %10 = vector.broadcast %9 : vector<1x128xf32> to vector<8x128xf32>
    %11 = arith.addf %8, %10 : vector<8x128xf32>
    %c0_8 = arith.constant 0 : index
    %c0_9 = arith.constant 0 : index
    %12 = vector.load %arg5[%c0_8, %c0_9] : memref<8x128xf32, #tpu.memory_space<vmem>>, vector<8x128xf32>
    tpu.vector_store %arg5[%c0_8, %c0_9], %11 {strides = array<i32>} : memref<8x128xf32, #tpu.memory_space<vmem>>, vector<8x128xf32>,
    return
  }
  func.func @transform_0(%arg0: i32) -> (i32, i32) {
    %c0_i32 = arith.constant 0 : i32
    %c0_i32_0 = arith.constant 0 : i32
    return %arg0, %c0_i32 : i32, i32
  }
  func.func @transform_1(%arg0: i32) -> (i32, i32) {
    %c0_i32 = arith.constant 0 : i32
    %c0_i32_0 = arith.constant 0 : i32
    %c0_i32_1 = arith.constant 0 : i32
    return %c0_i32, %c0_i32_0 : i32, i32
  }
  func.func @transform_2(%arg0: i32) -> (i32, i32) {
    %c0_i32 = arith.constant 0 : i32
    %c0_i32_0 = arith.constant 0 : i32
    %c0_i32_1 = arith.constant 0 : i32
    return %c0_i32, %c0_i32_0 : i32, i32
  }
  func.func @transform_3(%arg0: i32) -> (i32, i32) {
    %c0_i32 = arith.constant 0 : i32
    %c0_i32_0 = arith.constant 0 : i32
    %c0_i32_1 = arith.constant 0 : i32
    return %c0_i32, %c0_i32_0 : i32, i32
  }
  func.func @transform_4(%arg0: i32) -> (i32, i32) {
    %c0_i32 = arith.constant 0 : i32
    %c0_i32_0 = arith.constant 0 : i32
    return %arg0, %c0_i32 : i32, i32
  }
}

</mosaic_0001>

<llo_original>
// kernel: jw_model0_forward.1
$region0: #{jw_model0_forward.1}
  #allocation0 [shape = 'u32[]', space=smem, size = 0x4, offset = 0x4, fixed_abs, tag = 'smem constant byte address 0x4 - core index']
  #allocation1 [shape = 'u32[144,128]{1,0:T(1,128)}', space=vmem, size = 0x12000, scoped, tag = 'internal scratch']
  %s0 = inlined_call_operand.vmem [shape: bf16[8,65], index: 0, kind: input, shape index: {}]
  %s1 = inlined_call_operand.hbm [shape: bf16[65,2048], index: 1, kind: input, shape index: {}]
  %s2 = inlined_call_operand.hbm [shape: bf16[1024,128], index: 2, kind: input, shape index: {}]
  %s3 = inlined_call_operand.vmem [shape: f32[1,128], index: 3, kind: input, shape index: {}]
  %s4 = inlined_call_operand.hbm [shape: f32[8,128], index: 4, kind: output, shape index: {}]
  %s5 = sld [smem:[#allocation0]]
  $region34: #{jw_model0_forward.1} parent=0
    _
  %s7 = ssub.s32 1, %s5
  %s8 = scalar_select 0, %s7, %s5
  $region1: #{jw_model0_forward.1} parent=0
    #allocation2 [shape = 'u8[294912]{0}', space=vmem, size = 0x48000, scoped, tag = 'input window, operand 1, single buffered']
    #allocation3 [shape = 's32[1]{0}', space=sflag, size = 0x4, scoped, tag = 'scoped memory for jw_model0_forward.1']
    #allocation4 [shape = 's32[1]{0}', space=sflag, size = 0x4, scoped, tag = 'scoped memory for jw_model0_forward.1']
    #allocation5 [shape = 'u8[262144]{0}', space=vmem, size = 0x40000, scoped, tag = 'input window, operand 2, single buffered']
    #allocation6 [shape = 's32[1]{0}', space=sflag, size = 0x4, scoped, tag = 'scoped memory for jw_model0_forward.1']
    #allocation7 [shape = 'u8[4096]{0}', space=vmem, size = 0x1000, scoped, tag = 'output window, operand 0, single buffered']
    %9 = vsyncpa [#allocation3], 0
    %10 = vsyncpa [#allocation6], 0
    %11 = vsyncpa [#allocation4], 0
    // Predicated region
    $region2: #{jw_model0_forward.1} parent=1 // pred_check
      _
    $region3: #{jw_model0_forward.1} parent=1 // pred_check_branch
      %13 = sbr.rel (0) target = $region5
    $region4: #{jw_model0_forward.1} parent=1 // pred_region
      _
    $region5: #{jw_model0_forward.1} parent=1 // pred_fallthru
      _
    // Predicated region
    $region6: #{jw_model0_forward.1} parent=1 // pred_check
      _
    $region7: #{jw_model0_forward.1} parent=1 // pred_check_branch
      %15 = sbr.rel (0) target = $region9
    $region8: #{jw_model0_forward.1} parent=1 // pred_region
      %s17 = ssub.s32 9216, 9216
      %18 = vsyncadd [#allocation3], %s17
      %s19 = sshll.u32 [#allocation2], 4
      %s20 = int_to_ptr.vmem [resolvable:$true] %s19
      %25 = dma.hbm_to_vmem [thread:$0]  %s1, 9216, %s20, [#allocation3], 1024, 1024, 64
    $region9: #{jw_model0_forward.1} parent=1 // pred_fallthru
      _
    // Predicated region
    $region10: #{jw_model0_forward.1} parent=1 // pred_check
      _
    $region11: #{jw_model0_forward.1} parent=1 // pred_check_branch
      %27 = sbr.rel (0) target = $region13
    $region12: #{jw_model0_forward.1} parent=1 // pred_region
      %s29 = ssub.s32 8192, 8192
      %30 = vsyncadd [#allocation6], %s29
      %s31 = sshll.u32 [#allocation5], 4
      %s32 = int_to_ptr.vmem [resolvable:$true] %s31
      %37 = dma.hbm_to_vmem [thread:$0]  %s2, 8192, %s32, [#allocation6], 64, 64, 4
    $region13: #{jw_model0_forward.1} parent=1 // pred_fallthru
      _
    // Predicated region
    $region14: #{jw_model0_forward.1} parent=1 // pred_check
      _
    $region15: #{jw_model0_forward.1} parent=1 // pred_check_branch
      %39 = sbr.rel (0) target = $region17
    $region16: #{jw_model0_forward.1} parent=1 // pred_region
      _
    $region17: #{jw_model0_forward.1} parent=1 // pred_fallthru
      _
    // Predicated region
    $region18: #{jw_model0_forward.1} parent=1 // pred_check
      _
    $region19: #{jw_model0_forward.1} parent=1 // pred_check_branch
      %41 = sbr.rel (0) target = $region21
    $region20: #{jw_model0_forward.1} parent=1 // pred_region
      %42 = dma.done [#allocation3], 9216
    $region21: #{jw_model0_forward.1} parent=1 // pred_fallthru
      _
    // Predicated region
    $region22: #{jw_model0_forward.1} parent=1 // pred_check
      _
    $region23: #{jw_model0_forward.1} parent=1 // pred_check_branch
      %44 = sbr.rel (0) target = $region25
    $region24: #{jw_model0_forward.1} parent=1 // pred_region
      %45 = dma.done [#allocation6], 8192
    $region25: #{jw_model0_forward.1} parent=1 // pred_fallthru
      _
    %v47 = vld [vmem:[%s0] sm:$0xf]
    %v48 = vld [vmem:[#allocation2] sm:$0xff]
    %v49 = vld [vmem:[#allocation2 + $0x8] sm:$0xff]
    %v50 = vld [vmem:[#allocation2 + $0x10] sm:$0xff]
    %v51 = vld [vmem:[#allocation2 + $0x18] sm:$0xff]
    %v52 = vld [vmem:[#allocation2 + $0x20] sm:$0xff]
    %v53 = vld [vmem:[#allocation2 + $0x28] sm:$0xff]
    %v54 = vld [vmem:[#allocation2 + $0x30] sm:$0xff]
    %v55 = vld [vmem:[#allocation2 + $0x38] sm:$0xff]
    %v56 = vld [vmem:[#allocation2 + $0x40] sm:$0xff]
    %v57 = vld [vmem:[#allocation2 + $0x48] sm:$0xff]
    %v58 = vld [vmem:[#allocation2 + $0x50] sm:$0xff]
    %v59 = vld [vmem:[#allocation2 + $0x58] sm:$0xff]
    %v60 = vld [vmem:[#allocation2 + $0x60] sm:$0xff]
    %v61 = vld [vmem:[#allocation2 + $0x68] sm:$0xff]
    %v62 = vld [vmem:[#allocation2 + $0x70] sm:$0xff]
    %v63 = vld [vmem:[#allocation2 + $0x78] sm:$0xff]
    %v64 = vld [vmem:[#allocation2 + $0x80] sm:$0xff]
    %v65 = vld [vmem:[#allocation2 + $0x88] sm:$0xff]
    %v66 = vld [vmem:[#allocation2 + $0x90] sm:$0xff]
    %v67 = vld [vmem:[#allocation2 + $0x98] sm:$0xff]
    %v68 = vld [vmem:[#allocation2 + $0xa0] sm:$0xff]
    %v69 = vld [vmem:[#allocation2 + $0xa8] sm:$0xff]
    %v70 = vld [vmem:[#allocation2 + $0xb0] sm:$0xff]
    %v71 = vld [vmem:[#allocation2 + $0xb8] sm:$0xff]
    %v72 = vld [vmem:[#allocation2 + $0xc0] sm:$0xff]
    %v73 = vld [vmem:[#allocation2 + $0xc8] sm:$0xff]
    %v74 = vld [vmem:[#allocation2 + $0xd0] sm:$0xff]
    %v75 = vld [vmem:[#allocation2 + $0xd8] sm:$0xff]
    %v76 = vld [vmem:[#allocation2 + $0xe0] sm:$0xff]
    %v77 = vld [vmem:[#allocation2 + $0xe8] sm:$0xff]
    %v78 = vld [vmem:[#allocation2 + $0xf0] sm:$0xff]
    %v79 = vld [vmem:[#allocation2 + $0xf8] sm:$0xff]
    %v80 = vld [vmem:[#allocation2 + $0x100] sm:$0xff]
    %v81 = vld [vmem:[#allocation2 + $0x108] sm:$0xff]
    %v82 = vld [vmem:[#allocation2 + $0x110] sm:$0xff]
    %v83 = vld [vmem:[#allocation2 + $0x118] sm:$0xff]
    %v84 = vld [vmem:[#allocation2 + $0x120] sm:$0xff]
    %v85 = vld [vmem:[#allocation2 + $0x128] sm:$0xff]
    %v86 = vld [vmem:[#allocation2 + $0x130] sm:$0xff]
    %v87 = vld [vmem:[#allocation2 + $0x138] sm:$0xff]
    %v88 = vld [vmem:[#allocation2 + $0x140] sm:$0xff]
    %v89 = vld [vmem:[#allocation2 + $0x148] sm:$0xff]
    %v90 = vld [vmem:[#allocation2 + $0x150] sm:$0xff]
    %v91 = vld [vmem:[#allocation2 + $0x158] sm:$0xff]
    %v92 = vld [vmem:[#allocation2 + $0x160] sm:$0xff]
    %v93 = vld [vmem:[#allocation2 + $0x168] sm:$0xff]
    %v94 = vld [vmem:[#allocation2 + $0x170] sm:$0xff]
    %v95 = vld [vmem:[#allocation2 + $0x178] sm:$0xff]
    %v96 = vld [vmem:[#allocation2 + $0x180] sm:$0xff]
    %v97 = vld [vmem:[#allocation2 + $0x188] sm:$0xff]
    %v98 = vld [vmem:[#allocation2 + $0x190] sm:$0xff]
    %v99 = vld [vmem:[#allocation2 + $0x198] sm:$0xff]
    %v100 = vld [vmem:[#allocation2 + $0x1a0] sm:$0xff]
    %v101 = vld [vmem:[#allocation2 + $0x1a8] sm:$0xff]
    %v102 = vld [vmem:[#allocation2 + $0x1b0] sm:$0xff]
    %v103 = vld [vmem:[#allocation2 + $0x1b8] sm:$0xff]
    %v104 = vld [vmem:[#allocation2 + $0x1c0] sm:$0xff]
    %v105 = vld [vmem:[#allocation2 + $0x1c8] sm:$0xff]
    %v106 = vld [vmem:[#allocation2 + $0x1d0] sm:$0xff]
    %v107 = vld [vmem:[#allocation2 + $0x1d8] sm:$0xff]
    %v108 = vld [vmem:[#allocation2 + $0x1e0] sm:$0xff]
    %v109 = vld [vmem:[#allocation2 + $0x1e8] sm:$0xff]
    %v110 = vld [vmem:[#allocation2 + $0x1f0] sm:$0xff]
    %v111 = vld [vmem:[#allocation2 + $0x1f8] sm:$0xff]
    %v112 = vld [vmem:[#allocation2 + $0x200] sm:$0x11]
    %v113 = vld [vmem:[#allocation2 + $0x208] sm:$0x11]
    %v114 = vld [vmem:[#allocation2 + $0x210] sm:$0x11]
    %v115 = vld [vmem:[#allocation2 + $0x218] sm:$0x11]
    %v116 = vld [vmem:[#allocation2 + $0x220] sm:$0x11]
    %v117 = vld [vmem:[#allocation2 + $0x228] sm:$0x11]
    %v118 = vld [vmem:[#allocation2 + $0x230] sm:$0x11]
    %v119 = vld [vmem:[#allocation2 + $0x238] sm:$0x11]
    %v192 = vunpack.c.l.b16 %v48
    %v193 = vunpack.c.h.b16 %v48
    %v194 = vunpack.c.l.b16 %v49
    %v195 = vunpack.c.h.b16 %v49
    %v196 = vunpack.c.l.b16 %v50
    %v197 = vunpack.c.h.b16 %v50
    %v198 = vunpack.c.l.b16 %v51
    %v199 = vunpack.c.h.b16 %v51
    %v200 = vunpack.c.l.b16 %v52
    %v201 = vunpack.c.h.b16 %v52
    %v202 = vunpack.c.l.b16 %v53
    %v203 = vunpack.c.h.b16 %v53
    %v204 = vunpack.c.l.b16 %v54
    %v205 = vunpack.c.h.b16 %v54
    %v206 = vunpack.c.l.b16 %v55
    %v207 = vunpack.c.h.b16 %v55
    %v208 = vunpack.c.l.b16 %v56
    %v209 = vunpack.c.h.b16 %v56
    %v210 = vunpack.c.l.b16 %v57
    %v211 = vunpack.c.h.b16 %v57
    %v212 = vunpack.c.l.b16 %v58
    %v213 = vunpack.c.h.b16 %v58
    %v214 = vunpack.c.l.b16 %v59
    %v215 = vunpack.c.h.b16 %v59
    %v216 = vunpack.c.l.b16 %v60
    %v217 = vunpack.c.h.b16 %v60
    %v218 = vunpack.c.l.b16 %v61
    %v219 = vunpack.c.h.b16 %v61
    %v220 = vunpack.c.l.b16 %v62
    %v221 = vunpack.c.h.b16 %v62
    %v222 = vunpack.c.l.b16 %v63
    %v223 = vunpack.c.h.b16 %v63
    %v224 = vunpack.c.l.b16 %v64
    %v225 = vunpack.c.h.b16 %v64
    %v226 = vunpack.c.l.b16 %v65
    %v227 = vunpack.c.h.b16 %v65
    %v228 = vunpack.c.l.b16 %v66
    %v229 = vunpack.c.h.b16 %v66
    %v230 = vunpack.c.l.b16 %v67
    %v231 = vunpack.c.h.b16 %v67
    %v232 = vunpack.c.l.b16 %v68
    %v233 = vunpack.c.h.b16 %v68
    %v234 = vunpack.c.l.b16 %v69
    %v235 = vunpack.c.h.b16 %v69
    %v236 = vunpack.c.l.b16 %v70
    %v237 = vunpack.c.h.b16 %v70
    %v238 = vunpack.c.l.b16 %v71
    %v239 = vunpack.c.h.b16 %v71
    %v240 = vunpack.c.l.b16 %v72
    %v241 = vunpack.c.h.b16 %v72
    %v242 = vunpack.c.l.b16 %v73
    %v243 = vunpack.c.h.b16 %v73
    %v244 = vunpack.c.l.b16 %v74
    %v245 = vunpack.c.h.b16 %v74
    %v246 = vunpack.c.l.b16 %v75
    %v247 = vunpack.c.h.b16 %v75
    %v248 = vunpack.c.l.b16 %v76
    %v249 = vunpack.c.h.b16 %v76
    %v250 = vunpack.c.l.b16 %v77
    %v251 = vunpack.c.h.b16 %v77
    %v252 = vunpack.c.l.b16 %v78
    %v253 = vunpack.c.h.b16 %v78
    %v254 = vunpack.c.l.b16 %v79
    %v255 = vunpack.c.h.b16 %v79
    %v256 = vunpack.c.l.b16 %v80
    %v257 = vunpack.c.h.b16 %v80
    %v258 = vunpack.c.l.b16 %v81
    %v259 = vunpack.c.h.b16 %v81
    %v260 = vunpack.c.l.b16 %v82
    %v261 = vunpack.c.h.b16 %v82
    %v262 = vunpack.c.l.b16 %v83
    %v263 = vunpack.c.h.b16 %v83
    %v264 = vunpack.c.l.b16 %v84
    %v265 = vunpack.c.h.b16 %v84
    %v266 = vunpack.c.l.b16 %v85
    %v267 = vunpack.c.h.b16 %v85
    %v268 = vunpack.c.l.b16 %v86
    %v269 = vunpack.c.h.b16 %v86
    %v270 = vunpack.c.l.b16 %v87
    %v271 = vunpack.c.h.b16 %v87
    %v272 = vunpack.c.l.b16 %v88
    %v273 = vunpack.c.h.b16 %v88
    %v274 = vunpack.c.l.b16 %v89
    %v275 = vunpack.c.h.b16 %v89
    %v276 = vunpack.c.l.b16 %v90
    %v277 = vunpack.c.h.b16 %v90
    %v278 = vunpack.c.l.b16 %v91
    %v279 = vunpack.c.h.b16 %v91
    %v280 = vunpack.c.l.b16 %v92
    %v281 = vunpack.c.h.b16 %v92
    %v282 = vunpack.c.l.b16 %v93
    %v283 = vunpack.c.h.b16 %v93
    %v284 = vunpack.c.l.b16 %v94
    %v285 = vunpack.c.h.b16 %v94
    %v286 = vunpack.c.l.b16 %v95
    %v287 = vunpack.c.h.b16 %v95
    %v288 = vunpack.c.l.b16 %v96
    %v289 = vunpack.c.h.b16 %v96
    %v290 = vunpack.c.l.b16 %v97
    %v291 = vunpack.c.h.b16 %v97
    %v292 = vunpack.c.l.b16 %v98
    %v293 = vunpack.c.h.b16 %v98
    %v294 = vunpack.c.l.b16 %v99
    %v295 = vunpack.c.h.b16 %v99
    %v296 = vunpack.c.l.b16 %v100
    %v297 = vunpack.c.h.b16 %v100
    %v298 = vunpack.c.l.b16 %v101
    %v299 = vunpack.c.h.b16 %v101
    %v300 = vunpack.c.l.b16 %v102
    %v301 = vunpack.c.h.b16 %v102
    %v302 = vunpack.c.l.b16 %v103
    %v303 = vunpack.c.h.b16 %v103
    %v304 = vunpack.c.l.b16 %v104
    %v305 = vunpack.c.h.b16 %v104
    %v306 = vunpack.c.l.b16 %v105
    %v307 = vunpack.c.h.b16 %v105
    %v308 = vunpack.c.l.b16 %v106
    %v309 = vunpack.c.h.b16 %v106
    %v310 = vunpack.c.l.b16 %v107
    %v311 = vunpack.c.h.b16 %v107
    %v312 = vunpack.c.l.b16 %v108
    %v313 = vunpack.c.h.b16 %v108
    %v314 = vunpack.c.l.b16 %v109
    %v315 = vunpack.c.h.b16 %v109
    %v316 = vunpack.c.l.b16 %v110
    %v317 = vunpack.c.h.b16 %v110
    %v318 = vunpack.c.l.b16 %v111
    %v319 = vunpack.c.h.b16 %v111
    %v320 = vunpack.c.l.b16 %v112
    %v321 = vunpack.c.h.b16 %v112
    %v322 = vunpack.c.l.b16 %v113
    %v323 = vunpack.c.h.b16 %v113
    %v324 = vunpack.c.l.b16 %v114
    %v325 = vunpack.c.h.b16 %v114
    %v326 = vunpack.c.l.b16 %v115
    %v327 = vunpack.c.h.b16 %v115
    %v328 = vunpack.c.l.b16 %v116
    %v329 = vunpack.c.h.b16 %v116
    %v330 = vunpack.c.l.b16 %v117
    %v331 = vunpack.c.h.b16 %v117
    %v332 = vunpack.c.l.b16 %v118
    %v333 = vunpack.c.h.b16 %v118
    %v334 = vunpack.c.l.b16 %v119
    %v335 = vunpack.c.h.b16 %v119
    %v336 = vpack.c.b16 %v208, %v192
    %v337 = vpack.c.b16 %v209, %v193
    %v338 = vpack.c.b16 %v210, %v194
    %v339 = vpack.c.b16 %v211, %v195
    %v340 = vpack.c.b16 %v212, %v196
    %v341 = vpack.c.b16 %v213, %v197
    %v342 = vpack.c.b16 %v214, %v198
    %v343 = vpack.c.b16 %v215, %v199
    %v344 = vpack.c.b16 %v216, %v200
    %v345 = vpack.c.b16 %v217, %v201
    %v346 = vpack.c.b16 %v218, %v202
    %v347 = vpack.c.b16 %v219, %v203
    %v348 = vpack.c.b16 %v220, %v204
    %v349 = vpack.c.b16 %v221, %v205
    %v350 = vpack.c.b16 %v222, %v206
    %v351 = vpack.c.b16 %v223, %v207
    %v352 = vpack.c.b16 %v240, %v224
    %v353 = vpack.c.b16 %v241, %v225
    %v354 = vpack.c.b16 %v242, %v226
    %v355 = vpack.c.b16 %v243, %v227
    %v356 = vpack.c.b16 %v244, %v228
    %v357 = vpack.c.b16 %v245, %v229
    %v358 = vpack.c.b16 %v246, %v230
    %v359 = vpack.c.b16 %v247, %v231
    %v360 = vpack.c.b16 %v248, %v232
    %v361 = vpack.c.b16 %v249, %v233
    %v362 = vpack.c.b16 %v250, %v234
    %v363 = vpack.c.b16 %v251, %v235
    %v364 = vpack.c.b16 %v252, %v236
    %v365 = vpack.c.b16 %v253, %v237
    %v366 = vpack.c.b16 %v254, %v238
    %v367 = vpack.c.b16 %v255, %v239
    %v368 = vpack.c.b16 %v272, %v256
    %v369 = vpack.c.b16 %v273, %v257
    %v370 = vpack.c.b16 %v274, %v258
    %v371 = vpack.c.b16 %v275, %v259
    %v372 = vpack.c.b16 %v276, %v260
    %v373 = vpack.c.b16 %v277, %v261
    %v374 = vpack.c.b16 %v278, %v262
    %v375 = vpack.c.b16 %v279, %v263
    %v376 = vpack.c.b16 %v280, %v264
    %v377 = vpack.c.b16 %v281, %v265
    %v378 = vpack.c.b16 %v282, %v266
    %v379 = vpack.c.b16 %v283, %v267
    %v380 = vpack.c.b16 %v284, %v268
    %v381 = vpack.c.b16 %v285, %v269
    %v382 = vpack.c.b16 %v286, %v270
    %v383 = vpack.c.b16 %v287, %v271
    %v384 = vpack.c.b16 %v304, %v288
    %v385 = vpack.c.b16 %v305, %v289
    %v386 = vpack.c.b16 %v306, %v290
    %v387 = vpack.c.b16 %v307, %v291
    %v388 = vpack.c.b16 %v308, %v292
    %v389 = vpack.c.b16 %v309, %v293
    %v390 = vpack.c.b16 %v310, %v294
    %v391 = vpack.c.b16 %v311, %v295
    %v392 = vpack.c.b16 %v312, %v296
    %v393 = vpack.c.b16 %v313, %v297
    %v394 = vpack.c.b16 %v314, %v298
    %v395 = vpack.c.b16 %v315, %v299
    %v396 = vpack.c.b16 %v316, %v300
    %v397 = vpack.c.b16 %v317, %v301
    %v398 = vpack.c.b16 %v318, %v302
    %v399 = vpack.c.b16 %v319, %v303
    %v400 = vpack.c.b16 %v320, %v320
    %v401 = vpack.c.b16 %v321, %v321
    %v402 = vpack.c.b16 %v322, %v322
    %v403 = vpack.c.b16 %v323, %v323
    %v404 = vpack.c.b16 %v324, %v324
    %v405 = vpack.c.b16 %v325, %v325
    %v406 = vpack.c.b16 %v326, %v326
    %v407 = vpack.c.b16 %v327, %v327
    %v408 = vpack.c.b16 %v328, %v328
    %v409 = vpack.c.b16 %v329, %v329
    %v410 = vpack.c.b16 %v330, %v330
    %v411 = vpack.c.b16 %v331, %v331
    %v412 = vpack.c.b16 %v332, %v332
    %v413 = vpack.c.b16 %v333, %v333
    %v414 = vpack.c.b16 %v334, %v334
    %v415 = vpack.c.b16 %v335, %v335
    %vm480 = vcmask 531456
    %v482 = vsel %vm480, %v47, 0
    %vm484 = vcmask 1040384
    %v485 = vsel 0, 4294967295, 65535
    %v486 = vsel %vm484, %v485, 0
    %v488 = vand.u32 %v400, %v486
    %v491 = vand.u32 %v401, %v486
    %v494 = vand.u32 %v402, %v486
    %v497 = vand.u32 %v403, %v486
    %v500 = vand.u32 %v404, %v486
    %v503 = vand.u32 %v405, %v486
    %v506 = vand.u32 %v406, %v486
    %v509 = vand.u32 %v407, %v486
    %v512 = vand.u32 %v408, %v486
    %v515 = vand.u32 %v409, %v486
    %v518 = vand.u32 %v410, %v486
    %v521 = vand.u32 %v411, %v486
    %v524 = vand.u32 %v412, %v486
    %v527 = vand.u32 %v413, %v486
    %v530 = vand.u32 %v414, %v486
    %v533 = vand.u32 %v415, %v486
    %535 = vmatprep.subr.bf16.mxu0 %v337
    %536 = vmatpush1.bf16.msra.mxu0 %v336
    %537 = vmatprep.subr.bf16.mxu0 %v353
    %538 = vmatpush1.bf16.msra.mxu0 %v352
    %539 = vmatprep.subr.bf16.mxu0 %v369
    %540 = vmatpush1.bf16.msra.mxu0 %v368
    %541 = vmatprep.subr.bf16.mxu0 %v385
    %542 = vmatpush1.bf16.msra.mxu0 %v384
    %543 = vmatprep.subr.bf16.mxu0 %v491
    %544 = vmatpush1.bf16.msra.mxu0 %v488
    %545 = vmatprep.subr.bf16.mxu0 0
    %546 = vmatpush1.bf16.msra.mxu0 0
    %547 = vmatprep.subr.bf16.mxu0 0
    %548 = vmatpush1.bf16.msra.mxu0 0
    %549 = vmatprep.subr.bf16.mxu0 0
    %550 = vmatpush1.bf16.msra.mxu0 0
    %551 = vmatprep.subr.bf16.mxu0 0
    %552 = vmatpush1.bf16.msra.mxu0 0
    %553 = vmatprep.subr.bf16.mxu0 0
    %554 = vmatpush1.bf16.msra.mxu0 0
    %555 = vmatprep.subr.bf16.mxu0 0
    %556 = vmatpush1.bf16.msra.mxu0 0
    %557 = vmatprep.subr.bf16.mxu0 0
    %558 = vmatpush1.bf16.msra.mxu0 0
    %559 = vmatprep.subr.bf16.mxu0 0
    %560 = vmatpush1.bf16.msra.mxu0 0
    %561 = vmatprep.subr.bf16.mxu0 0
    %562 = vmatpush1.bf16.msra.mxu0 0
    %563 = vmatprep.subr.bf16.mxu0 0
    %564 = vmatpush1.bf16.msra.mxu0 0
    %565 = vmatprep.subr.bf16.mxu0 0
    %566 = vmatpush1.bf16.msra.mxu0 0
    %567 = vmatprep.mubr.bf16.mxu0 0
    %568 = vmatmul.mubr.bf16.gmra.mrb[0].mxu0 %v482
    %v569 = vpop.f32.mrb[0].mxu0
    %v570 = vadd.f32 0.0, %v569
    %v571 = vpop.f32.mrb[0].mxu0
    %v572 = vadd.f32 0.0, %v571
    %v573 = vpop.f32.mrb[0].mxu0
    %v574 = vpop.f32.mrb[0].mxu0
    %575 = vdwg.mxu0
    %576 = vmatprep.subr.bf16.mxu0 %v339
    %577 = vmatpush1.bf16.msra.mxu0 %v338
    %578 = vmatprep.subr.bf16.mxu0 %v355
    %579 = vmatpush1.bf16.msra.mxu0 %v354
    %580 = vmatprep.subr.bf16.mxu0 %v371
    %581 = vmatpush1.bf16.msra.mxu0 %v370
    %582 = vmatprep.subr.bf16.mxu0 %v387
    %583 = vmatpush1.bf16.msra.mxu0 %v386
    %584 = vmatprep.subr.bf16.mxu0 %v497
    %585 = vmatpush1.bf16.msra.mxu0 %v494
    %586 = vmatprep.subr.bf16.mxu0 0
    %587 = vmatpush1.bf16.msra.mxu0 0
    %588 = vmatprep.subr.bf16.mxu0 0
    %589 = vmatpush1.bf16.msra.mxu0 0
    %590 = vmatprep.subr.bf16.mxu0 0
    %591 = vmatpush1.bf16.msra.mxu0 0
    %592 = vmatprep.subr.bf16.mxu0 0
    %593 = vmatpush1.bf16.msra.mxu0 0
    %594 = vmatprep.subr.bf16.mxu0 0
    %595 = vmatpush1.bf16.msra.mxu0 0
    %596 = vmatprep.subr.bf16.mxu0 0
    %597 = vmatpush1.bf16.msra.mxu0 0
    %598 = vmatprep.subr.bf16.mxu0 0
    %599 = vmatpush1.bf16.msra.mxu0 0
    %600 = vmatprep.subr.bf16.mxu0 0
    %601 = vmatpush1.bf16.msra.mxu0 0
    %602 = vmatprep.subr.bf16.mxu0 0
    %603 = vmatpush1.bf16.msra.mxu0 0
    %604 = vmatprep.subr.bf16.mxu0 0
    %605 = vmatpush1.bf16.msra.mxu0 0
    %606 = vmatprep.subr.bf16.mxu0 0
    %607 = vmatpush1.bf16.msra.mxu0 0
    %608 = vmatprep.mubr.bf16.mxu0 0
    %609 = vmatmul.mubr.bf16.gmra.mrb[0].mxu0 %v482
    %v610 = vpop.f32.mrb[0].mxu0
    %v611 = vadd.f32 0.0, %v610
    %v612 = vpop.f32.mrb[0].mxu0
    %v613 = vadd.f32 0.0, %v612
    %v614 = vpop.f32.mrb[0].mxu0
    %v615 = vpop.f32.mrb[0].mxu0
    %616 = vdwg.mxu0
    %617 = vmatprep.subr.bf16.mxu0 %v341
    %618 = vmatpush1.bf16.msra.mxu0 %v340
    %619 = vmatprep.subr.bf16.mxu0 %v357
    %620 = vmatpush1.bf16.msra.mxu0 %v356
    %621 = vmatprep.subr.bf16.mxu0 %v373
    %622 = vmatpush1.bf16.msra.mxu0 %v372
    %623 = vmatprep.subr.bf16.mxu0 %v389
    %624 = vmatpush1.bf16.msra.mxu0 %v388
    %625 = vmatprep.subr.bf16.mxu0 %v503
    %626 = vmatpush1.bf16.msra.mxu0 %v500
    %627 = vmatprep.subr.bf16.mxu0 0
    %628 = vmatpush1.bf16.msra.mxu0 0
    %629 = vmatprep.subr.bf16.mxu0 0
    %630 = vmatpush1.bf16.msra.mxu0 0
    %631 = vmatprep.subr.bf16.mxu0 0
    %632 = vmatpush1.bf16.msra.mxu0 0
    %633 = vmatprep.subr.bf16.mxu0 0
    %634 = vmatpush1.bf16.msra.mxu0 0
    %635 = vmatprep.subr.bf16.mxu0 0
    %636 = vmatpush1.bf16.msra.mxu0 0
    %637 = vmatprep.subr.bf16.mxu0 0
    %638 = vmatpush1.bf16.msra.mxu0 0
    %639 = vmatprep.subr.bf16.mxu0 0
    %640 = vmatpush1.bf16.msra.mxu0 0
    %641 = vmatprep.subr.bf16.mxu0 0
    %642 = vmatpush1.bf16.msra.mxu0 0
    %643 = vmatprep.subr.bf16.mxu0 0
    %644 = vmatpush1.bf16.msra.mxu0 0
    %645 = vmatprep.subr.bf16.mxu0 0
    %646 = vmatpush1.bf16.msra.mxu0 0
    %647 = vmatprep.subr.bf16.mxu0 0
    %648 = vmatpush1.bf16.msra.mxu0 0
    %649 = vmatprep.mubr.bf16.mxu0 0
    %650 = vmatmul.mubr.bf16.gmra.mrb[0].mxu0 %v482
    %v651 = vpop.f32.mrb[0].mxu0
    %v652 = vadd.f32 0.0, %v651
    %v653 = vpop.f32.mrb[0].mxu0
    %v654 = vadd.f32 0.0, %v653
    %v655 = vpop.f32.mrb[0].mxu0
    %v656 = vpop.f32.mrb[0].mxu0
    %657 = vdwg.mxu0
    %658 = vmatprep.subr.bf16.mxu0 %v343
    %659 = vmatpush1.bf16.msra.mxu0 %v342
    %660 = vmatprep.subr.bf16.mxu0 %v359
    %661 = vmatpush1.bf16.msra.mxu0 %v358
    %662 = vmatprep.subr.bf16.mxu0 %v375
    %663 = vmatpush1.bf16.msra.mxu0 %v374
    %664 = vmatprep.subr.bf16.mxu0 %v391
    %665 = vmatpush1.bf16.msra.mxu0 %v390
    %666 = vmatprep.subr.bf16.mxu0 %v509
    %667 = vmatpush1.bf16.msra.mxu0 %v506
    %668 = vmatprep.subr.bf16.mxu0 0
    %669 = vmatpush1.bf16.msra.mxu0 0
    %670 = vmatprep.subr.bf16.mxu0 0
    %671 = vmatpush1.bf16.msra.mxu0 0
    %672 = vmatprep.subr.bf16.mxu0 0
    %673 = vmatpush1.bf16.msra.mxu0 0
    %674 = vmatprep.subr.bf16.mxu0 0
    %675 = vmatpush1.bf16.msra.mxu0 0
    %676 = vmatprep.subr.bf16.mxu0 0
    %677 = vmatpush1.bf16.msra.mxu0 0
    %678 = vmatprep.subr.bf16.mxu0 0
    %679 = vmatpush1.bf16.msra.mxu0 0
    %680 = vmatprep.subr.bf16.mxu0 0
    %681 = vmatpush1.bf16.msra.mxu0 0
    %682 = vmatprep.subr.bf16.mxu0 0
    %683 = vmatpush1.bf16.msra.mxu0 0
    %684 = vmatprep.subr.bf16.mxu0 0
    %685 = vmatpush1.bf16.msra.mxu0 0
    %686 = vmatprep.subr.bf16.mxu0 0
    %687 = vmatpush1.bf16.msra.mxu0 0
    %688 = vmatprep.subr.bf16.mxu0 0
    %689 = vmatpush1.bf16.msra.mxu0 0
    %690 = vmatprep.mubr.bf16.mxu0 0
    %691 = vmatmul.mubr.bf16.gmra.mrb[0].mxu0 %v482
    %v692 = vpop.f32.mrb[0].mxu0
    %v693 = vadd.f32 0.0, %v692
    %v694 = vpop.f32.mrb[0].mxu0
    %v695 = vadd.f32 0.0, %v694
    %v696 = vpop.f32.mrb[0].mxu0
    %v697 = vpop.f32.mrb[0].mxu0
    %698 = vdwg.mxu0
    %699 = vmatprep.subr.bf16.mxu0 %v345
    %700 = vmatpush1.bf16.msra.mxu0 %v344
    %701 = vmatprep.subr.bf16.mxu0 %v361
    %702 = vmatpush1.bf16.msra.mxu0 %v360
    %703 = vmatprep.subr.bf16.mxu0 %v377
    %704 = vmatpush1.bf16.msra.mxu0 %v376
    %705 = vmatprep.subr.bf16.mxu0 %v393
    %706 = vmatpush1.bf16.msra.mxu0 %v392
    %707 = vmatprep.subr.bf16.mxu0 %v515
    %708 = vmatpush1.bf16.msra.mxu0 %v512
    %709 = vmatprep.subr.bf16.mxu0 0
    %710 = vmatpush1.bf16.msra.mxu0 0
    %711 = vmatprep.subr.bf16.mxu0 0
    %712 = vmatpush1.bf16.msra.mxu0 0
    %713 = vmatprep.subr.bf16.mxu0 0
    %714 = vmatpush1.bf16.msra.mxu0 0
    %715 = vmatprep.subr.bf16.mxu0 0
    %716 = vmatpush1.bf16.msra.mxu0 0
    %717 = vmatprep.subr.bf16.mxu0 0
    %718 = vmatpush1.bf16.msra.mxu0 0
    %719 = vmatprep.subr.bf16.mxu0 0
    %720 = vmatpush1.bf16.msra.mxu0 0
    %721 = vmatprep.subr.bf16.mxu0 0
    %722 = vmatpush1.bf16.msra.mxu0 0
    %723 = vmatprep.subr.bf16.mxu0 0
    %724 = vmatpush1.bf16.msra.mxu0 0
    %725 = vmatprep.subr.bf16.mxu0 0
    %726 = vmatpush1.bf16.msra.mxu0 0
    %727 = vmatprep.subr.bf16.mxu0 0
    %728 = vmatpush1.bf16.msra.mxu0 0
    %729 = vmatprep.subr.bf16.mxu0 0
    %730 = vmatpush1.bf16.msra.mxu0 0
    %731 = vmatprep.mubr.bf16.mxu0 0
    %732 = vmatmul.mubr.bf16.gmra.mrb[0].mxu0 %v482
    %v733 = vpop.f32.mrb[0].mxu0
    %v734 = vadd.f32 0.0, %v733
    %v735 = vpop.f32.mrb[0].mxu0
    %v736 = vadd.f32 0.0, %v735
    %v737 = vpop.f32.mrb[0].mxu0
    %v738 = vpop.f32.mrb[0].mxu0
    %739 = vdwg.mxu0
    %740 = vmatprep.subr.bf16.mxu0 %v347
    %741 = vmatpush1.bf16.msra.mxu0 %v346
    %742 = vmatprep.subr.bf16.mxu0 %v363
    %743 = vmatpush1.bf16.msra.mxu0 %v362
    %744 = vmatprep.subr.bf16.mxu0 %v379
    %745 = vmatpush1.bf16.msra.mxu0 %v378
    %746 = vmatprep.subr.bf16.mxu0 %v395
    %747 = vmatpush1.bf16.msra.mxu0 %v394
    %748 = vmatprep.subr.bf16.mxu0 %v521
    %749 = vmatpush1.bf16.msra.mxu0 %v518
    %750 = vmatprep.subr.bf16.mxu0 0
    %751 = vmatpush1.bf16.msra.mxu0 0
    %752 = vmatprep.subr.bf16.mxu0 0
    %753 = vmatpush1.bf16.msra.mxu0 0
    %754 = vmatprep.subr.bf16.mxu0 0
    %755 = vmatpush1.bf16.msra.mxu0 0
    %756 = vmatprep.subr.bf16.mxu0 0
    %757 = vmatpush1.bf16.msra.mxu0 0
    %758 = vmatprep.subr.bf16.mxu0 0
    %759 = vmatpush1.bf16.msra.mxu0 0
    %760 = vmatprep.subr.bf16.mxu0 0
    %761 = vmatpush1.bf16.msra.mxu0 0
    %762 = vmatprep.subr.bf16.mxu0 0
    %763 = vmatpush1.bf16.msra.mxu0 0
    %764 = vmatprep.subr.bf16.mxu0 0
    %765 = vmatpush1.bf16.msra.mxu0 0
    %766 = vmatprep.subr.bf16.mxu0 0
    %767 = vmatpush1.bf16.msra.mxu0 0
    %768 = vmatprep.subr.bf16.mxu0 0
    %769 = vmatpush1.bf16.msra.mxu0 0
    %770 = vmatprep.subr.bf16.mxu0 0
    %771 = vmatpush1.bf16.msra.mxu0 0
    %772 = vmatprep.mubr.bf16.mxu0 0
    %773 = vmatmul.mubr.bf16.gmra.mrb[0].mxu0 %v482
    %v774 = vpop.f32.mrb[0].mxu0
    %v775 = vadd.f32 0.0, %v774
    %v776 = vpop.f32.mrb[0].mxu0
    %v777 = vadd.f32 0.0, %v776
    %v778 = vpop.f32.mrb[0].mxu0
    %v779 = vpop.f32.mrb[0].mxu0
    %780 = vdwg.mxu0
    %781 = vmatprep.subr.bf16.mxu0 %v349
    %782 = vmatpush1.bf16.msra.mxu0 %v348
    %783 = vmatprep.subr.bf16.mxu0 %v365
    %784 = vmatpush1.bf16.msra.mxu0 %v364
    %785 = vmatprep.subr.bf16.mxu0 %v381
    %786 = vmatpush1.bf16.msra.mxu0 %v380
    %787 = vmatprep.subr.bf16.mxu0 %v397
    %788 = vmatpush1.bf16.msra.mxu0 %v396
    %789 = vmatprep.subr.bf16.mxu0 %v527
    %790 = vmatpush1.bf16.msra.mxu0 %v524
    %791 = vmatprep.subr.bf16.mxu0 0
    %792 = vmatpush1.bf16.msra.mxu0 0
    %793 = vmatprep.subr.bf16.mxu0 0
    %794 = vmatpush1.bf16.msra.mxu0 0
    %795 = vmatprep.subr.bf16.mxu0 0
    %796 = vmatpush1.bf16.msra.mxu0 0
    %797 = vmatprep.subr.bf16.mxu0 0
    %798 = vmatpush1.bf16.msra.mxu0 0
    %799 = vmatprep.subr.bf16.mxu0 0
    %800 = vmatpush1.bf16.msra.mxu0 0
    %801 = vmatprep.subr.bf16.mxu0 0
    %802 = vmatpush1.bf16.msra.mxu0 0
    %803 = vmatprep.subr.bf16.mxu0 0
    %804 = vmatpush1.bf16.msra.mxu0 0
    %805 = vmatprep.subr.bf16.mxu0 0
    %806 = vmatpush1.bf16.msra.mxu0 0
    %807 = vmatprep.subr.bf16.mxu0 0
    %808 = vmatpush1.bf16.msra.mxu0 0
    %809 = vmatprep.subr.bf16.mxu0 0
    %810 = vmatpush1.bf16.msra.mxu0 0
    %811 = vmatprep.subr.bf16.mxu0 0
    %812 = vmatpush1.bf16.msra.mxu0 0
    %813 = vmatprep.mubr.bf16.mxu0 0
    %814 = vmatmul.mubr.bf16.gmra.mrb[0].mxu0 %v482
    %v815 = vpop.f32.mrb[0].mxu0
    %v816 = vadd.f32 0.0, %v815
    %v817 = vpop.f32.mrb[0].mxu0
    %v818 = vadd.f32 0.0, %v817
    %v819 = vpop.f32.mrb[0].mxu0
    %v820 = vpop.f32.mrb[0].mxu0
    %821 = vdwg.mxu0
    %822 = vmatprep.subr.bf16.mxu0 %v351
    %823 = vmatpush1.bf16.msra.mxu0 %v350
    %824 = vmatprep.subr.bf16.mxu0 %v367
    %825 = vmatpush1.bf16.msra.mxu0 %v366
    %826 = vmatprep.subr.bf16.mxu0 %v383
    %827 = vmatpush1.bf16.msra.mxu0 %v382
    %828 = vmatprep.subr.bf16.mxu0 %v399
    %829 = vmatpush1.bf16.msra.mxu0 %v398
    %830 = vmatprep.subr.bf16.mxu0 %v533
    %831 = vmatpush1.bf16.msra.mxu0 %v530
    %832 = vmatprep.subr.bf16.mxu0 0
    %833 = vmatpush1.bf16.msra.mxu0 0
    %834 = vmatprep.subr.bf16.mxu0 0
    %835 = vmatpush1.bf16.msra.mxu0 0
    %836 = vmatprep.subr.bf16.mxu0 0
    %837 = vmatpush1.bf16.msra.mxu0 0
    %838 = vmatprep.subr.bf16.mxu0 0
    %839 = vmatpush1.bf16.msra.mxu0 0
    %840 = vmatprep.subr.bf16.mxu0 0
    %841 = vmatpush1.bf16.msra.mxu0 0
    %842 = vmatprep.subr.bf16.mxu0 0
    %843 = vmatpush1.bf16.msra.mxu0 0
    %844 = vmatprep.subr.bf16.mxu0 0
    %845 = vmatpush1.bf16.msra.mxu0 0
    %846 = vmatprep.subr.bf16.mxu0 0
    %847 = vmatpush1.bf16.msra.mxu0 0
    %848 = vmatprep.subr.bf16.mxu0 0
    %849 = vmatpush1.bf16.msra.mxu0 0
    %850 = vmatprep.subr.bf16.mxu0 0
    %851 = vmatpush1.bf16.msra.mxu0 0
    %852 = vmatprep.subr.bf16.mxu0 0
    %853 = vmatpush1.bf16.msra.mxu0 0
    %854 = vmatprep.mubr.bf16.mxu0 0
    %855 = vmatmul.mubr.bf16.gmra.mrb[0].mxu0 %v482
    %v856 = vpop.f32.mrb[0].mxu0
    %v857 = vadd.f32 0.0, %v856
    %v858 = vpop.f32.mrb[0].mxu0
    %v859 = vadd.f32 0.0, %v858
    %v860 = vpop.f32.mrb[0].mxu0
    %v861 = vpop.f32.mrb[0].mxu0
    %862 = vdwg.mxu0
    %v863 = vmax.f32 %v570, %v734
    %v864 = vmax.f32 %v572, %v736
    %v865 = vmax.f32 %v611, %v775
    %v866 = vmax.f32 %v613, %v777
    %v867 = vmax.f32 %v652, %v816
    %v868 = vmax.f32 %v654, %v818
    %v869 = vmax.f32 %v693, %v857
    %v870 = vmax.f32 %v695, %v859
    %v871 = vpack.c.bf16 %v863, %v863
    %v872 = vpack.c.bf16 %v864, %v864
    %v873 = vpack.c.bf16 %v865, %v865
    %v874 = vpack.c.bf16 %v866, %v866
    %v875 = vpack.c.bf16 %v867, %v867
    %v876 = vpack.c.bf16 %v868, %v868
    %v877 = vpack.c.bf16 %v869, %v869
    %v878 = vpack.c.bf16 %v870, %v870
    %v879 = vld [vmem:[#allocation5] sm:$0xf]
    %v880 = vld [vmem:[#allocation5 + $0x4] sm:$0xf]
    %v881 = vld [vmem:[#allocation5 + $0x8] sm:$0xf]
    %v882 = vld [vmem:[#allocation5 + $0xc] sm:$0xf]
    %v883 = vld [vmem:[#allocation5 + $0x10] sm:$0xf]
    %v884 = vld [vmem:[#allocation5 + $0x14] sm:$0xf]
    %v885 = vld [vmem:[#allocation5 + $0x18] sm:$0xf]
    %v886 = vld [vmem:[#allocation5 + $0x1c] sm:$0xf]
    %v887 = vld [vmem:[#allocation5 + $0x20] sm:$0xf]
    %v888 = vld [vmem:[#allocation5 + $0x24] sm:$0xf]
    %v889 = vld [vmem:[#allocation5 + $0x28] sm:$0xf]
    %v890 = vld [vmem:[#allocation5 + $0x2c] sm:$0xf]
    %v891 = vld [vmem:[#allocation5 + $0x30] sm:$0xf]
    %v892 = vld [vmem:[#allocation5 + $0x34] sm:$0xf]
    %v893 = vld [vmem:[#allocation5 + $0x38] sm:$0xf]
    %v894 = vld [vmem:[#allocation5 + $0x3c] sm:$0xf]
    %v895 = vld [vmem:[#allocation5 + $0x40] sm:$0xf]
    %v896 = vld [vmem:[#allocation5 + $0x44] sm:$0xf]
    %v897 = vld [vmem:[#allocation5 + $0x48] sm:$0xf]
    %v898 = vld [vmem:[#allocation5 + $0x4c] sm:$0xf]
    %v899 = vld [vmem:[#allocation5 + $0x50] sm:$0xf]
    %v900 = vld [vmem:[#allocation5 + $0x54] sm:$0xf]
    %v901 = vld [vmem:[#allocation5 + $0x58] sm:$0xf]
    %v902 = vld [vmem:[#allocation5 + $0x5c] sm:$0xf]
    %v903 = vld [vmem:[#allocation5 + $0x60] sm:$0xf]
    %v904 = vld [vmem:[#allocation5 + $0x64] sm:$0xf]
    %v905 = vld [vmem:[#allocation5 + $0x68] sm:$0xf]
    %v906 = vld [vmem:[#allocation5 + $0x6c] sm:$0xf]
    %v907 = vld [vmem:[#allocation5 + $0x70] sm:$0xf]
    %v908 = vld [vmem:[#allocation5 + $0x74] sm:$0xf]
    %v909 = vld [vmem:[#allocation5 + $0x78] sm:$0xf]
    %v910 = vld [vmem:[#allocation5 + $0x7c] sm:$0xf]
    %v911 = vld [vmem:[#allocation5 + $0x80] sm:$0xf]
    %v912 = vld [vmem:[#allocation5 + $0x84] sm:$0xf]
    %v913 = vld [vmem:[#allocation5 + $0x88] sm:$0xf]
    %v914 = vld [vmem:[#allocation5 + $0x8c] sm:$0xf]
    %v915 = vld [vmem:[#allocation5 + $0x90] sm:$0xf]
    %v916 = vld [vmem:[#allocation5 + $0x94] sm:$0xf]
    %v917 = vld [vmem:[#allocation5 + $0x98] sm:$0xf]
    %v918 = vld [vmem:[#allocation5 + $0x9c] sm:$0xf]
    %v919 = vld [vmem:[#allocation5 + $0xa0] sm:$0xf]
    %v920 = vld [vmem:[#allocation5 + $0xa4] sm:$0xf]
    %v921 = vld [vmem:[#allocation5 + $0xa8] sm:$0xf]
    %v922 = vld [vmem:[#allocation5 + $0xac] sm:$0xf]
    %v923 = vld [vmem:[#allocation5 + $0xb0] sm:$0xf]
    %v924 = vld [vmem:[#allocation5 + $0xb4] sm:$0xf]
    %v925 = vld [vmem:[#allocation5 + $0xb8] sm:$0xf]
    %v926 = vld [vmem:[#allocation5 + $0xbc] sm:$0xf]
    %v927 = vld [vmem:[#allocation5 + $0xc0] sm:$0xf]
    %v928 = vld [vmem:[#allocation5 + $0xc4] sm:$0xf]
    %v929 = vld [vmem:[#allocation5 + $0xc8] sm:$0xf]
    %v930 = vld [vmem:[#allocation5 + $0xcc] sm:$0xf]
    %v931 = vld [vmem:[#allocation5 + $0xd0] sm:$0xf]
    %v932 = vld [vmem:[#allocation5 + $0xd4] sm:$0xf]
    %v933 = vld [vmem:[#allocation5 + $0xd8] sm:$0xf]
    %v934 = vld [vmem:[#allocation5 + $0xdc] sm:$0xf]
    %v935 = vld [vmem:[#allocation5 + $0xe0] sm:$0xf]
    %v936 = vld [vmem:[#allocation5 + $0xe4] sm:$0xf]
    %v937 = vld [vmem:[#allocation5 + $0xe8] sm:$0xf]
    %v938 = vld [vmem:[#allocation5 + $0xec] sm:$0xf]
    %v939 = vld [vmem:[#allocation5 + $0xf0] sm:$0xf]
    %v940 = vld [vmem:[#allocation5 + $0xf4] sm:$0xf]
    %v941 = vld [vmem:[#allocation5 + $0xf8] sm:$0xf]
    %v942 = vld [vmem:[#allocation5 + $0xfc] sm:$0xf]
    %v943 = vld [vmem:[#allocation5 + $0x100] sm:$0xf]
    %v944 = vld [vmem:[#allocation5 + $0x104] sm:$0xf]
    %v945 = vld [vmem:[#allocation5 + $0x108] sm:$0xf]
    %v946 = vld [vmem:[#allocation5 + $0x10c] sm:$0xf]
    %v947 = vld [vmem:[#allocation5 + $0x110] sm:$0xf]
    %v948 = vld [vmem:[#allocation5 + $0x114] sm:$0xf]
    %v949 = vld [vmem:[#allocation5 + $0x118] sm:$0xf]
    %v950 = vld [vmem:[#allocation5 + $0x11c] sm:$0xf]
    %v951 = vld [vmem:[#allocation5 + $0x120] sm:$0xf]
    %v952 = vld [vmem:[#allocation5 + $0x124] sm:$0xf]
    %v953 = vld [vmem:[#allocation5 + $0x128] sm:$0xf]
    %v954 = vld [vmem:[#allocation5 + $0x12c] sm:$0xf]
    %v955 = vld [vmem:[#allocation5 + $0x130] sm:$0xf]
    %v956 = vld [vmem:[#allocation5 + $0x134] sm:$0xf]
    %v957 = vld [vmem:[#allocation5 + $0x138] sm:$0xf]
    %v958 = vld [vmem:[#allocation5 + $0x13c] sm:$0xf]
    %v959 = vld [vmem:[#allocation5 + $0x140] sm:$0xf]
    %v960 = vld [vmem:[#allocation5 + $0x144] sm:$0xf]
    %v961 = vld [vmem:[#allocation5 + $0x148] sm:$0xf]
    %v962 = vld [vmem:[#allocation5 + $0x14c] sm:$0xf]
    %v963 = vld [vmem:[#allocation5 + $0x150] sm:$0xf]
    %v964 = vld [vmem:[#allocation5 + $0x154] sm:$0xf]
    %v965 = vld [vmem:[#allocation5 + $0x158] sm:$0xf]
    %v966 = vld [vmem:[#allocation5 + $0x15c] sm:$0xf]
    %v967 = vld [vmem:[#allocation5 + $0x160] sm:$0xf]
    %v968 = vld [vmem:[#allocation5 + $0x164] sm:$0xf]
    %v969 = vld [vmem:[#allocation5 + $0x168] sm:$0xf]
    %v970 = vld [vmem:[#allocation5 + $0x16c] sm:$0xf]
    %v971 = vld [vmem:[#allocation5 + $0x170] sm:$0xf]
    %v972 = vld [vmem:[#allocation5 + $0x174] sm:$0xf]
    %v973 = vld [vmem:[#allocation5 + $0x178] sm:$0xf]
    %v974 = vld [vmem:[#allocation5 + $0x17c] sm:$0xf]
    %v975 = vld [vmem:[#allocation5 + $0x180] sm:$0xf]
    %v976 = vld [vmem:[#allocation5 + $0x184] sm:$0xf]
    %v977 = vld [vmem:[#allocation5 + $0x188] sm:$0xf]
    %v978 = vld [vmem:[#allocation5 + $0x18c] sm:$0xf]
    %v979 = vld [vmem:[#allocation5 + $0x190] sm:$0xf]
    %v980 = vld [vmem:[#allocation5 + $0x194] sm:$0xf]
    %v981 = vld [vmem:[#allocation5 + $0x198] sm:$0xf]
    %v982 = vld [vmem:[#allocation5 + $0x19c] sm:$0xf]
    %v983 = vld [vmem:[#allocation5 + $0x1a0] sm:$0xf]
    %v984 = vld [vmem:[#allocation5 + $0x1a4] sm:$0xf]
    %v985 = vld [vmem:[#allocation5 + $0x1a8] sm:$0xf]
    %v986 = vld [vmem:[#allocation5 + $0x1ac] sm:$0xf]
    %v987 = vld [vmem:[#allocation5 + $0x1b0] sm:$0xf]
    %v988 = vld [vmem:[#allocation5 + $0x1b4] sm:$0xf]
    %v989 = vld [vmem:[#allocation5 + $0x1b8] sm:$0xf]
    %v990 = vld [vmem:[#allocation5 + $0x1bc] sm:$0xf]
    %v991 = vld [vmem:[#allocation5 + $0x1c0] sm:$0xf]
    %v992 = vld [vmem:[#allocation5 + $0x1c4] sm:$0xf]
    %v993 = vld [vmem:[#allocation5 + $0x1c8] sm:$0xf]
    %v994 = vld [vmem:[#allocation5 + $0x1cc] sm:$0xf]
    %v995 = vld [vmem:[#allocation5 + $0x1d0] sm:$0xf]
    %v996 = vld [vmem:[#allocation5 + $0x1d4] sm:$0xf]
    %v997 = vld [vmem:[#allocation5 + $0x1d8] sm:$0xf]
    %v998 = vld [vmem:[#allocation5 + $0x1dc] sm:$0xf]
    %v999 = vld [vmem:[#allocation5 + $0x1e0] sm:$0xf]
    %v1000 = vld [vmem:[#allocation5 + $0x1e4] sm:$0xf]
    %v1001 = vld [vmem:[#allocation5 + $0x1e8] sm:$0xf]
    %v1002 = vld [vmem:[#allocation5 + $0x1ec] sm:$0xf]
    %v1003 = vld [vmem:[#allocation5 + $0x1f0] sm:$0xf]
    %v1004 = vld [vmem:[#allocation5 + $0x1f4] sm:$0xf]
    %v1005 = vld [vmem:[#allocation5 + $0x1f8] sm:$0xf]
    %v1006 = vld [vmem:[#allocation5 + $0x1fc] sm:$0xf]
    %v1007 = vld [vmem:[%s3] sm:$0x1]
    %v1009 = vlaneseq
    %v1010 = vshrl.u32 %v1009, 7
    %v1011 = vsub.s32 0, %v1010
    %v1012 = vrot.slane %v1007, %v1011
    %v1142 = vunpack.c.l.b16 %v879
    %v1143 = vunpack.c.l.b16 %v880
    %v1144 = vunpack.c.l.b16 %v881
    %v1145 = vunpack.c.l.b16 %v882
    %v1146 = vunpack.c.l.b16 %v883
    %v1147 = vunpack.c.l.b16 %v884
    %v1148 = vunpack.c.l.b16 %v885
    %v1149 = vunpack.c.l.b16 %v886
    %v1150 = vunpack.c.l.b16 %v887
    %v1151 = vunpack.c.l.b16 %v888
    %v1152 = vunpack.c.l.b16 %v889
    %v1153 = vunpack.c.l.b16 %v890
    %v1154 = vunpack.c.l.b16 %v891
    %v1155 = vunpack.c.l.b16 %v892
    %v1156 = vunpack.c.l.b16 %v893
    %v1157 = vunpack.c.l.b16 %v894
    %v1158 = vunpack.c.l.b16 %v895
    %v1159 = vunpack.c.l.b16 %v896
    %v1160 = vunpack.c.l.b16 %v897
    %v1161 = vunpack.c.l.b16 %v898
    %v1162 = vunpack.c.l.b16 %v899
    %v1163 = vunpack.c.l.b16 %v900
    %v1164 = vunpack.c.l.b16 %v901
    %v1165 = vunpack.c.l.b16 %v902
    %v1166 = vunpack.c.l.b16 %v903
    %v1167 = vunpack.c.l.b16 %v904
    %v1168 = vunpack.c.l.b16 %v905
    %v1169 = vunpack.c.l.b16 %v906
    %v1170 = vunpack.c.l.b16 %v907
    %v1171 = vunpack.c.l.b16 %v908
    %v1172 = vunpack.c.l.b16 %v909
    %v1173 = vunpack.c.l.b16 %v910
    %v1174 = vunpack.c.l.b16 %v911
    %v1175 = vunpack.c.l.b16 %v912
    %v1176 = vunpack.c.l.b16 %v913
    %v1177 = vunpack.c.l.b16 %v914
    %v1178 = vunpack.c.l.b16 %v915
    %v1179 = vunpack.c.l.b16 %v916
    %v1180 = vunpack.c.l.b16 %v917
    %v1181 = vunpack.c.l.b16 %v918
    %v1182 = vunpack.c.l.b16 %v919
    %v1183 = vunpack.c.l.b16 %v920
    %v1184 = vunpack.c.l.b16 %v921
    %v1185 = vunpack.c.l.b16 %v922
    %v1186 = vunpack.c.l.b16 %v923
    %v1187 = vunpack.c.l.b16 %v924
    %v1188 = vunpack.c.l.b16 %v925
    %v1189 = vunpack.c.l.b16 %v926
    %v1190 = vunpack.c.l.b16 %v927
    %v1191 = vunpack.c.l.b16 %v928
    %v1192 = vunpack.c.l.b16 %v929
    %v1193 = vunpack.c.l.b16 %v930
    %v1194 = vunpack.c.l.b16 %v931
    %v1195 = vunpack.c.l.b16 %v932
    %v1196 = vunpack.c.l.b16 %v933
    %v1197 = vunpack.c.l.b16 %v934
    %v1198 = vunpack.c.l.b16 %v935
    %v1199 = vunpack.c.l.b16 %v936
    %v1200 = vunpack.c.l.b16 %v937
    %v1201 = vunpack.c.l.b16 %v938
    %v1202 = vunpack.c.l.b16 %v939
    %v1203 = vunpack.c.l.b16 %v940
    %v1204 = vunpack.c.l.b16 %v941
    %v1205 = vunpack.c.l.b16 %v942
    %v1206 = vunpack.c.l.b16 %v943
    %v1207 = vunpack.c.l.b16 %v944
    %v1208 = vunpack.c.l.b16 %v945
    %v1209 = vunpack.c.l.b16 %v946
    %v1210 = vunpack.c.l.b16 %v947
    %v1211 = vunpack.c.l.b16 %v948
    %v1212 = vunpack.c.l.b16 %v949
    %v1213 = vunpack.c.l.b16 %v950
    %v1214 = vunpack.c.l.b16 %v951
    %v1215 = vunpack.c.l.b16 %v952
    %v1216 = vunpack.c.l.b16 %v953
    %v1217 = vunpack.c.l.b16 %v954
    %v1218 = vunpack.c.l.b16 %v955
    %v1219 = vunpack.c.l.b16 %v956
    %v1220 = vunpack.c.l.b16 %v957
    %v1221 = vunpack.c.l.b16 %v958
    %v1222 = vunpack.c.l.b16 %v959
    %v1223 = vunpack.c.l.b16 %v960
    %v1224 = vunpack.c.l.b16 %v961
    %v1225 = vunpack.c.l.b16 %v962
    %v1226 = vunpack.c.l.b16 %v963
    %v1227 = vunpack.c.l.b16 %v964
    %v1228 = vunpack.c.l.b16 %v965
    %v1229 = vunpack.c.l.b16 %v966
    %v1230 = vunpack.c.l.b16 %v967
    %v1231 = vunpack.c.l.b16 %v968
    %v1232 = vunpack.c.l.b16 %v969
    %v1233 = vunpack.c.l.b16 %v970
    %v1234 = vunpack.c.l.b16 %v971
    %v1235 = vunpack.c.l.b16 %v972
    %v1236 = vunpack.c.l.b16 %v973
    %v1237 = vunpack.c.l.b16 %v974
    %v1238 = vunpack.c.l.b16 %v975
    %v1239 = vunpack.c.l.b16 %v976
    %v1240 = vunpack.c.l.b16 %v977
    %v1241 = vunpack.c.l.b16 %v978
    %v1242 = vunpack.c.l.b16 %v979
    %v1243 = vunpack.c.l.b16 %v980
    %v1244 = vunpack.c.l.b16 %v981
    %v1245 = vunpack.c.l.b16 %v982
    %v1246 = vunpack.c.l.b16 %v983
    %v1247 = vunpack.c.l.b16 %v984
    %v1248 = vunpack.c.l.b16 %v985
    %v1249 = vunpack.c.l.b16 %v986
    %v1250 = vunpack.c.l.b16 %v987
    %v1251 = vunpack.c.l.b16 %v988
    %v1252 = vunpack.c.l.b16 %v989
    %v1253 = vunpack.c.l.b16 %v990
    %v1254 = vunpack.c.l.b16 %v991
    %v1255 = vunpack.c.l.b16 %v992
    %v1256 = vunpack.c.l.b16 %v993
    %v1257 = vunpack.c.l.b16 %v994
    %v1258 = vunpack.c.l.b16 %v995
    %v1259 = vunpack.c.l.b16 %v996
    %v1260 = vunpack.c.l.b16 %v997
    %v1261 = vunpack.c.l.b16 %v998
    %v1262 = vunpack.c.l.b16 %v999
    %v1263 = vunpack.c.l.b16 %v1000
    %v1264 = vunpack.c.l.b16 %v1001
    %v1265 = vunpack.c.l.b16 %v1002
    %v1266 = vunpack.c.l.b16 %v1003
    %v1267 = vunpack.c.l.b16 %v1004
    %v1268 = vunpack.c.l.b16 %v1005
    %v1269 = vunpack.c.l.b16 %v1006
    %v1270 = vpack.c.b16 %v1143, %v1142
    %v1271 = vpack.c.b16 %v1145, %v1144
    %v1272 = vpack.c.b16 %v1147, %v1146
    %v1273 = vpack.c.b16 %v1149, %v1148
    %v1274 = vpack.c.b16 %v1151, %v1150
    %v1275 = vpack.c.b16 %v1153, %v1152
    %v1276 = vpack.c.b16 %v1155, %v1154
    %v1277 = vpack.c.b16 %v1157, %v1156
    %v1278 = vpack.c.b16 %v1159, %v1158
    %v1279 = vpack.c.b16 %v1161, %v1160
    %v1280 = vpack.c.b16 %v1163, %v1162
    %v1281 = vpack.c.b16 %v1165, %v1164
    %v1282 = vpack.c.b16 %v1167, %v1166
    %v1283 = vpack.c.b16 %v1169, %v1168
    %v1284 = vpack.c.b16 %v1171, %v1170
    %v1285 = vpack.c.b16 %v1173, %v1172
    %v1286 = vpack.c.b16 %v1175, %v1174
    %v1287 = vpack.c.b16 %v1177, %v1176
    %v1288 = vpack.c.b16 %v1179, %v1178
    %v1289 = vpack.c.b16 %v1181, %v1180
    %v1290 = vpack.c.b16 %v1183, %v1182
    %v1291 = vpack.c.b16 %v1185, %v1184
    %v1292 = vpack.c.b16 %v1187, %v1186
    %v1293 = vpack.c.b16 %v1189, %v1188
    %v1294 = vpack.c.b16 %v1191, %v1190
    %v1295 = vpack.c.b16 %v1193, %v1192
    %v1296 = vpack.c.b16 %v1195, %v1194
    %v1297 = vpack.c.b16 %v1197, %v1196
    %v1298 = vpack.c.b16 %v1199, %v1198
    %v1299 = vpack.c.b16 %v1201, %v1200
    %v1300 = vpack.c.b16 %v1203, %v1202
    %v1301 = vpack.c.b16 %v1205, %v1204
    %v1302 = vpack.c.b16 %v1207, %v1206
    %v1303 = vpack.c.b16 %v1209, %v1208
    %v1304 = vpack.c.b16 %v1211, %v1210
    %v1305 = vpack.c.b16 %v1213, %v1212
    %v1306 = vpack.c.b16 %v1215, %v1214
    %v1307 = vpack.c.b16 %v1217, %v1216
    %v1308 = vpack.c.b16 %v1219, %v1218
    %v1309 = vpack.c.b16 %v1221, %v1220
    %v1310 = vpack.c.b16 %v1223, %v1222
    %v1311 = vpack.c.b16 %v1225, %v1224
    %v1312 = vpack.c.b16 %v1227, %v1226
    %v1313 = vpack.c.b16 %v1229, %v1228
    %v1314 = vpack.c.b16 %v1231, %v1230
    %v1315 = vpack.c.b16 %v1233, %v1232
    %v1316 = vpack.c.b16 %v1235, %v1234
    %v1317 = vpack.c.b16 %v1237, %v1236
    %v1318 = vpack.c.b16 %v1239, %v1238
    %v1319 = vpack.c.b16 %v1241, %v1240
    %v1320 = vpack.c.b16 %v1243, %v1242
    %v1321 = vpack.c.b16 %v1245, %v1244
    %v1322 = vpack.c.b16 %v1247, %v1246
    %v1323 = vpack.c.b16 %v1249, %v1248
    %v1324 = vpack.c.b16 %v1251, %v1250
    %v1325 = vpack.c.b16 %v1253, %v1252
    %v1326 = vpack.c.b16 %v1255, %v1254
    %v1327 = vpack.c.b16 %v1257, %v1256
    %v1328 = vpack.c.b16 %v1259, %v1258
    %v1329 = vpack.c.b16 %v1261, %v1260
    %v1330 = vpack.c.b16 %v1263, %v1262
    %v1331 = vpack.c.b16 %v1265, %v1264
    %v1332 = vpack.c.b16 %v1267, %v1266
    %v1333 = vpack.c.b16 %v1269, %v1268
    %1398 = vmatprep.subr.bf16.mxu0 0
    %1399 = vmatpush1.bf16.msra.mxu0 %v1270
    %1400 = vmatprep.subr.bf16.mxu0 0
    %1401 = vmatpush1.bf16.msra.mxu0 %v1271
    %1402 = vmatprep.subr.bf16.mxu0 0
    %1403 = vmatpush1.bf16.msra.mxu0 %v1272
    %1404 = vmatprep.subr.bf16.mxu0 0
    %1405 = vmatpush1.bf16.msra.mxu0 %v1273
    %1406 = vmatprep.subr.bf16.mxu0 0
    %1407 = vmatpush1.bf16.msra.mxu0 %v1274
    %1408 = vmatprep.subr.bf16.mxu0 0
    %1409 = vmatpush1.bf16.msra.mxu0 %v1275
    %1410 = vmatprep.subr.bf16.mxu0 0
    %1411 = vmatpush1.bf16.msra.mxu0 %v1276
    %1412 = vmatprep.subr.bf16.mxu0 0
    %1413 = vmatpush1.bf16.msra.mxu0 %v1277
    %1414 = vmatprep.subr.bf16.mxu0 0
    %1415 = vmatpush1.bf16.msra.mxu0 %v1278
    %1416 = vmatprep.subr.bf16.mxu0 0
    %1417 = vmatpush1.bf16.msra.mxu0 %v1279
    %1418 = vmatprep.subr.bf16.mxu0 0
    %1419 = vmatpush1.bf16.msra.mxu0 %v1280
    %1420 = vmatprep.subr.bf16.mxu0 0
    %1421 = vmatpush1.bf16.msra.mxu0 %v1281
    %1422 = vmatprep.subr.bf16.mxu0 0
    %1423 = vmatpush1.bf16.msra.mxu0 %v1282
    %1424 = vmatprep.subr.bf16.mxu0 0
    %1425 = vmatpush1.bf16.msra.mxu0 %v1283
    %1426 = vmatprep.subr.bf16.mxu0 0
    %1427 = vmatpush1.bf16.msra.mxu0 %v1284
    %1428 = vmatprep.subr.bf16.mxu0 0
    %1429 = vmatpush1.bf16.msra.mxu0 %v1285
    %1430 = vmatprep.mubr.bf16.mxu0 %v872
    %1431 = vmatmul.mubr.bf16.gmra.mrb[0].mxu0 %v871
    %v1432 = vpop.f32.mrb[0].mxu0
    %v1433 = vadd.f32 %v1012, %v1432
    %v1434 = vpop.f32.mrb[0].mxu0
    %v1435 = vpop.f32.mrb[0].mxu0
    %v1436 = vpop.f32.mrb[0].mxu0
    %1437 = vdwg.mxu0
    %1438 = vmatprep.subr.bf16.mxu0 0
    %1439 = vmatpush1.bf16.msra.mxu0 %v1286
    %1440 = vmatprep.subr.bf16.mxu0 0
    %1441 = vmatpush1.bf16.msra.mxu0 %v1287
    %1442 = vmatprep.subr.bf16.mxu0 0
    %1443 = vmatpush1.bf16.msra.mxu0 %v1288
    %1444 = vmatprep.subr.bf16.mxu0 0
    %1445 = vmatpush1.bf16.msra.mxu0 %v1289
    %1446 = vmatprep.subr.bf16.mxu0 0
    %1447 = vmatpush1.bf16.msra.mxu0 %v1290
    %1448 = vmatprep.subr.bf16.mxu0 0
    %1449 = vmatpush1.bf16.msra.mxu0 %v1291
    %1450 = vmatprep.subr.bf16.mxu0 0
    %1451 = vmatpush1.bf16.msra.mxu0 %v1292
    %1452 = vmatprep.subr.bf16.mxu0 0
    %1453 = vmatpush1.bf16.msra.mxu0 %v1293
    %1454 = vmatprep.subr.bf16.mxu0 0
    %1455 = vmatpush1.bf16.msra.mxu0 %v1294
    %1456 = vmatprep.subr.bf16.mxu0 0
    %1457 = vmatpush1.bf16.msra.mxu0 %v1295
    %1458 = vmatprep.subr.bf16.mxu0 0
    %1459 = vmatpush1.bf16.msra.mxu0 %v1296
    %1460 = vmatprep.subr.bf16.mxu0 0
    %1461 = vmatpush1.bf16.msra.mxu0 %v1297
    %1462 = vmatprep.subr.bf16.mxu0 0
    %1463 = vmatpush1.bf16.msra.mxu0 %v1298
    %1464 = vmatprep.subr.bf16.mxu0 0
    %1465 = vmatpush1.bf16.msra.mxu0 %v1299
    %1466 = vmatprep.subr.bf16.mxu0 0
    %1467 = vmatpush1.bf16.msra.mxu0 %v1300
    %1468 = vmatprep.subr.bf16.mxu0 0
    %1469 = vmatpush1.bf16.msra.mxu0 %v1301
    %1470 = vmatprep.mubr.bf16.mxu0 %v874
    %1471 = vmatmul.mubr.bf16.gmra.mrb[0].mxu0 %v873
    %v1472 = vpop.f32.mrb[0].mxu0
    %v1473 = vadd.f32 %v1433, %v1472
    %v1474 = vpop.f32.mrb[0].mxu0
    %v1475 = vpop.f32.mrb[0].mxu0
    %v1476 = vpop.f32.mrb[0].mxu0
    %1477 = vdwg.mxu0
    %1478 = vmatprep.subr.bf16.mxu0 0
    %1479 = vmatpush1.bf16.msra.mxu0 %v1302
    %1480 = vmatprep.subr.bf16.mxu0 0
    %1481 = vmatpush1.bf16.msra.mxu0 %v1303
    %1482 = vmatprep.subr.bf16.mxu0 0
    %1483 = vmatpush1.bf16.msra.mxu0 %v1304
    %1484 = vmatprep.subr.bf16.mxu0 0
    %1485 = vmatpush1.bf16.msra.mxu0 %v1305
    %1486 = vmatprep.subr.bf16.mxu0 0
    %1487 = vmatpush1.bf16.msra.mxu0 %v1306
    %1488 = vmatprep.subr.bf16.mxu0 0
    %1489 = vmatpush1.bf16.msra.mxu0 %v1307
    %1490 = vmatprep.subr.bf16.mxu0 0
    %1491 = vmatpush1.bf16.msra.mxu0 %v1308
    %1492 = vmatprep.subr.bf16.mxu0 0
    %1493 = vmatpush1.bf16.msra.mxu0 %v1309
    %1494 = vmatprep.subr.bf16.mxu0 0
    %1495 = vmatpush1.bf16.msra.mxu0 %v1310
    %1496 = vmatprep.subr.bf16.mxu0 0
    %1497 = vmatpush1.bf16.msra.mxu0 %v1311
    %1498 = vmatprep.subr.bf16.mxu0 0
    %1499 = vmatpush1.bf16.msra.mxu0 %v1312
    %1500 = vmatprep.subr.bf16.mxu0 0
    %1501 = vmatpush1.bf16.msra.mxu0 %v1313
    %1502 = vmatprep.subr.bf16.mxu0 0
    %1503 = vmatpush1.bf16.msra.mxu0 %v1314
    %1504 = vmatprep.subr.bf16.mxu0 0
    %1505 = vmatpush1.bf16.msra.mxu0 %v1315
    %1506 = vmatprep.subr.bf16.mxu0 0
    %1507 = vmatpush1.bf16.msra.mxu0 %v1316
    %1508 = vmatprep.subr.bf16.mxu0 0
    %1509 = vmatpush1.bf16.msra.mxu0 %v1317
    %1510 = vmatprep.mubr.bf16.mxu0 %v876
    %1511 = vmatmul.mubr.bf16.gmra.mrb[0].mxu0 %v875
    %v1512 = vpop.f32.mrb[0].mxu0
    %v1513 = vadd.f32 %v1473, %v1512
    %v1514 = vpop.f32.mrb[0].mxu0
    %v1515 = vpop.f32.mrb[0].mxu0
    %v1516 = vpop.f32.mrb[0].mxu0
    %1517 = vdwg.mxu0
    %1518 = vmatprep.subr.bf16.mxu0 0
    %1519 = vmatpush1.bf16.msra.mxu0 %v1318
    %1520 = vmatprep.subr.bf16.mxu0 0
    %1521 = vmatpush1.bf16.msra.mxu0 %v1319
    %1522 = vmatprep.subr.bf16.mxu0 0
    %1523 = vmatpush1.bf16.msra.mxu0 %v1320
    %1524 = vmatprep.subr.bf16.mxu0 0
    %1525 = vmatpush1.bf16.msra.mxu0 %v1321
    %1526 = vmatprep.subr.bf16.mxu0 0
    %1527 = vmatpush1.bf16.msra.mxu0 %v1322
    %1528 = vmatprep.subr.bf16.mxu0 0
    %1529 = vmatpush1.bf16.msra.mxu0 %v1323
    %1530 = vmatprep.subr.bf16.mxu0 0
    %1531 = vmatpush1.bf16.msra.mxu0 %v1324
    %1532 = vmatprep.subr.bf16.mxu0 0
    %1533 = vmatpush1.bf16.msra.mxu0 %v1325
    %1534 = vmatprep.subr.bf16.mxu0 0
    %1535 = vmatpush1.bf16.msra.mxu0 %v1326
    %1536 = vmatprep.subr.bf16.mxu0 0
    %1537 = vmatpush1.bf16.msra.mxu0 %v1327
    %1538 = vmatprep.subr.bf16.mxu0 0
    %1539 = vmatpush1.bf16.msra.mxu0 %v1328
    %1540 = vmatprep.subr.bf16.mxu0 0
    %1541 = vmatpush1.bf16.msra.mxu0 %v1329
    %1542 = vmatprep.subr.bf16.mxu0 0
    %1543 = vmatpush1.bf16.msra.mxu0 %v1330
    %1544 = vmatprep.subr.bf16.mxu0 0
    %1545 = vmatpush1.bf16.msra.mxu0 %v1331
    %1546 = vmatprep.subr.bf16.mxu0 0
    %1547 = vmatpush1.bf16.msra.mxu0 %v1332
    %1548 = vmatprep.subr.bf16.mxu0 0
    %1549 = vmatpush1.bf16.msra.mxu0 %v1333
    %1550 = vmatprep.mubr.bf16.mxu0 %v878
    %1551 = vmatmul.mubr.bf16.gmra.mrb[0].mxu0 %v877
    %v1552 = vpop.f32.mrb[0].mxu0
    %v1553 = vadd.f32 %v1513, %v1552
    %v1554 = vpop.f32.mrb[0].mxu0
    %v1555 = vpop.f32.mrb[0].mxu0
    %v1556 = vpop.f32.mrb[0].mxu0
    %1557 = vdwg.mxu0
    %1558 = vst [vmem:[#allocation7] sm:$0xff] %v1553
    // Predicated region
    $region26: #{jw_model0_forward.1} parent=1 // pred_check
      _
    $region27: #{jw_model0_forward.1} parent=1 // pred_check_branch
      %1560 = sbr.rel (0) target = $region29
    $region28: #{jw_model0_forward.1} parent=1 // pred_region
      %s1562 = ssub.s32 128, 128
      %1563 = vsyncadd [#allocation4], %s1562
      %s1565 = sshll.u32 [#allocation7], 4
      %s1566 = int_to_ptr.vmem [resolvable:$true] %s1565
      %1568 = dma.vmem_to_hbm [thread:$0]  %s1566, 128, %s4, [#allocation4]
    $region29: #{jw_model0_forward.1} parent=1 // pred_fallthru
      _
    // Predicated region
    $region30: #{jw_model0_forward.1} parent=1 // pred_check
      _
    $region31: #{jw_model0_forward.1} parent=1 // pred_check_branch
      %1570 = sbr.rel (0) target = $region33
    $region32: #{jw_model0_forward.1} parent=1 // pred_region
      %1571 = dma.done [#allocation4], 128
    $region33: #{jw_model0_forward.1} parent=1 // pred_fallthru
      _
    %1572 = vsyncpa [#allocation3], 1
    %1573 = vsyncpa [#allocation6], 1
    %1574 = vsyncpa [#allocation4], 1

</llo_original>
